<compile_context>
chip_gen: v6e
topology: v6e:2x2x1
jax: 0.10.0
libtpu: 0.0.40
codegen_flags: <defaults>
</compile_context>

<pallas_src>
import functools
import math

import jax
import jax.numpy as jnp
from jax import lax
from jax.experimental import pallas as pl
from jax.experimental.pallas import tpu as pltpu

BN_EPS = 1e-5                 # torch.nn.BatchNorm1d default eps
NORM_EPS = 1e-12              # torch F.normalize default eps
NORM_EPS_SQ = NORM_EPS * NORM_EPS
NEG_INF = -1e30               # mask value for lane-padded cluster columns
# ~2^-12 rel. error EUP reciprocal in the softmax; set False for bit-closer
# parity against the f32 PyTorch reference.
APPROX_RECIPROCAL = True


# ---------------------------------------------------------------------------
# generation-aware sizing helpers
# ---------------------------------------------------------------------------
def _vmem_limit_bytes():
    """Scoped-VMEM limit with headroom, derived from the physical capacity."""
    cap = None
    try:
        info = pltpu.get_tpu_info()
        for name in ("vmem_capacity_bytes", "vmem_bytes", "vmem_size_bytes"):
            cap = getattr(info, name, None)
            if cap:
                break
    except Exception:
        cap = None
    if not cap:
        return 48 * 1024 * 1024          # safe on every generation
    # ~25% headroom for double-buffered BlockSpec windows + internal scratch:
    # ~48 MiB on v7x (64 MiB/TC), ~96-100 MiB on v5e/v6e (128 MiB).
    return min(int(cap) * 3 // 4, 100 * 1024 * 1024)


def _largest_divisor(total, candidates):
    for c in candidates:
        if 0 < c <= total and total % c == 0:
            return c
    return total


def _pick_batch_tile(batch):
    # Batch several samples per phase-2 grid step to amortize the ~600-cycle
    # per-step overhead, but keep >= 2 grid steps when possible so both
    # TensorCores of a v7x megacore stay busy (batch axis is "parallel").
    if batch < 2:
        return batch
    cands = tuple(c for c in (8, 4, 2, 1) if batch // c >= 2)
    return _largest_divisor(batch, cands)


def _pick_kd_tile(kd, bytes_per_unit, budget_bytes):
    """Largest lane-aligned (multiple-of-128) tile of K*D that fits the budget."""
    if kd % 128 != 0:
        return kd
    cands = sorted((t for t in range(128, kd + 1, 128) if kd % t == 0),
                   reverse=True)
    for t in cands:
        if t * bytes_per_unit <= budget_bytes:
            return t
    return cands[-1]


# ---------------------------------------------------------------------------
# kernels
# ---------------------------------------------------------------------------
def _bn_stats_kernel(x_ref, cw_ref, mean_ref, invstd_ref, sum_sc, ssq_sc,
                     *, inv_count):
    # x_ref:   (R, D)   row tile of the flattened input (matmul dtype)
    # cw_ref:  (D, Kp)  lane-padded cluster_weights
    # outputs: mean/invstd (1, Kp) f32 -- global BatchNorm1d(K) batch stats
    i = pl.program_id(0)

    @pl.when(i == 0)
    def _init():
        sum_sc[...] = jnp.zeros_like(sum_sc)
        ssq_sc[...] = jnp.zeros_like(ssq_sc)

    act = jnp.dot(x_ref[...].astype(cw_ref.dtype), cw_ref[...],
                  preferred_element_type=jnp.float32)          # (R, Kp) f32
    sum_sc[...] += jnp.sum(act, axis=0, keepdims=True)
    ssq_sc[...] += jnp.sum(act * act, axis=0, keepdims=True)

    @pl.when(i == pl.num_programs(0) - 1)
    def _finalize():
        mean = sum_sc[...] * inv_count
        # TODO(synk): E[x^2]-E[x]^2 in f32; switch to a shifted two-pass
        # variance if BN stats drift vs torch for extreme activation scales.
        var = ssq_sc[...] * inv_count - mean * mean            # biased (training)
        mean_ref[...] = mean
        invstd_ref[...] = lax.rsqrt(jnp.maximum(var, 0.0) + BN_EPS)


def _vlad_kernel(x_ref, cw_ref, cw2t_ref, mean_ref, invstd_ref, vlad_ref,
                 *, k_valid):
    # x_ref:      (TB, N, D)  TB samples' features (matmul dtype)
    # cw_ref:     (D, Kp)     lane-padded cluster_weights
    # cw2t_ref:   (K, D)      cluster_weights2[0].T (f32)
    # mean_ref:   (1, Kp)     global BN mean
    # invstd_ref: (1, Kp)     global BN inv-std
    # vlad_ref:   (TB, K, D)  doubly-normalised VLAD, (K, D) layout (D on lanes)
    tb, n, d = x_ref.shape
    kp = cw_ref.shape[1]

    x = x_ref[...]                                   # (TB, N, D)
    x2 = x.reshape(tb * n, d)                        # leading-dim merge (free)

    # One (TB*N, D) @ (D, Kp) assignment matmul for the whole block, then
    # BatchNorm1d(K) with the global batch stats and a (masked) softmax.
    act = jnp.dot(x2, cw_ref[...], preferred_element_type=jnp.float32)
    act = (act - mean_ref[...]) * invstd_ref[...]
    if kp != k_valid:                                # mask lane padding
        col = lax.broadcasted_iota(jnp.int32, act.shape, 1)
        act = jnp.where(col < k_valid, act, NEG_INF)
    act = act - jnp.max(act, axis=-1, keepdims=True)
    act = jnp.exp(act)
    act = act * pl.reciprocal(jnp.sum(act, axis=-1, keepdims=True),
                              approx=APPROX_RECIPROCAL)
    act_mm = act.astype(x.dtype)                     # MXU operand dtype

    cw2t = cw2t_ref[...]                             # (K, D) f32, hoisted
    ones_col = jnp.ones((n, 1), x.dtype)             # hoisted out of the loop

    # Per-sample residual aggregation + normalisation.  The batch axis cannot
    # be fused into one MXU contraction (block-diagonal), so a static unroll
    # over the TB samples of this grid step costs the same MXU work as a
    # batched einsum while amortising the per-grid-step overhead.
    for b in range(tb):
        a_b = act_mm[b * n:(b + 1) * n, :]           # (N, Kp)
        x_b = x[b]                                   # (N, D)
        # vlad[k, d] = sum_n act[n, k] * x[n, d]  (torch: act.permute(0,2,1)@x)
        vl = lax.dot_general(a_b, x_b, (((0,), (0,)), ((), ())),
                             preferred_element_type=jnp.float32)[:k_valid, :]
        # a_sum as (K, 1) so it broadcasts along the lane (D) axis
        a_sum = lax.dot_general(a_b, ones_col, (((0,), (0,)), ((), ())),
                                preferred_element_type=jnp.float32)[:k_valid, :]
        vl = vl - a_sum * cw2t                       # residual aggregation

        # F.normalize(vlad, dim=1): per-cluster L2 over the feature axis.
        # 1 / max(||v||, eps) == rsqrt(max(sum(v^2), eps^2))
        inv1 = lax.rsqrt(jnp.maximum(jnp.sum(vl * vl, axis=1, keepdims=True),
                                     NORM_EPS_SQ))
        vl = vl * inv1
        # F.normalize over the flattened (K*D) descriptor of this sample
        inv2 = lax.rsqrt(jnp.maximum(
            jnp.sum(vl * vl, axis=(0, 1), keepdims=True), NORM_EPS_SQ))
        vlad_ref[b] = (vl * inv2).astype(vlad_ref.dtype)


def _head_kernel(v_ref, w_ref, gw_ref, out_ref, acc_ref):
    # v_ref:   (B, TKD)   flattened-VLAD slice for this reduction tile
    # w_ref:   (TKD, O)   hidden1_weights slice (pre-laid-out to k*D+d order)
    # gw_ref:  (O, O)     gating_weights
    # out_ref: (B, O)     gated output
    # acc_ref: (B, O) f32 resident accumulator across the K*D reduction
    kt = pl.program_id(0)

    @pl.when(kt == 0)
    def _init():
        acc_ref[...] = jnp.zeros_like(acc_ref)

    # Single long MXU contraction per weight tile, accumulated straight into
    # the resident scratch (no unrolled per-k mini-matmuls).
    acc_ref[...] += jnp.dot(v_ref[...].astype(w_ref.dtype), w_ref[...],
                            preferred_element_type=jnp.float32)

    @pl.when(kt == pl.num_programs(0) - 1)
    def _finalize():
        h = acc_ref[...]                                            # (B, O)
        # GatingContext: gates = h @ W, BatchNorm1d(O) with global batch stats
        # (B stays un-tiled so they are correct), sigmoid, elementwise product.
        gates = jnp.dot(h.astype(gw_ref.dtype), gw_ref[...],
                        preferred_element_type=jnp.float32)
        mean = jnp.mean(gates, axis=0, keepdims=True)
        var = jnp.mean(jnp.square(gates - mean), axis=0, keepdims=True)
        gates = (gates - mean) * lax.rsqrt(var + BN_EPS)
        gates = 1.0 / (1.0 + jnp.exp(-gates))
        out_ref[...] = h * gates


# ---------------------------------------------------------------------------
# parameters & wrapper
# ---------------------------------------------------------------------------
def init_netvlad_params(key, feature_size, cluster_size, output_dim):
    k1, k2, k3, k4 = jax.random.split(key, 4)
    d, k, o = feature_size, cluster_size, output_dim
    return {
        'cluster_weights': (jax.random.normal(k1, (d, k), jnp.float32)
                            * (1.0 / math.sqrt(d))),
        'cluster_weights2': (jax.random.normal(k2, (1, d, k), jnp.float32)
                             * (1.0 / math.sqrt(d))),
        'hidden1_weights': (jax.random.normal(k3, (k * d, o), jnp.float32)
                            * (1.0 / math.sqrt(k))),
        'gating_weights': (jax.random.normal(k4, (o, o), jnp.float32)
                           * (1.0 / math.sqrt(o))),
    }


def prepare_netvlad_params(params, *, use_bf16_matmul=True):
    """One-time parameter re-layout / casts.  Cache the result across calls:
    this hoists a full HBM round trip of the largest tensor (the (K*D, O)
    hidden1 weight transpose) out of every forward call."""
    d, k = params['cluster_weights'].shape
    o = params['hidden1_weights'].shape[1]
    mm_dtype = jnp.bfloat16 if use_bf16_matmul else jnp.float32

    # Lane-pad the cluster dim to a multiple of 128 (padded logits are masked
    # to -inf before the softmax inside the kernel).
    kp = k if k % 128 == 0 else ((k // 128) + 1) * 128
    cw = params['cluster_weights'].astype(mm_dtype)              # (D, K)
    if kp != k:
        cw = jnp.pad(cw, ((0, 0), (0, kp - k)))                  # (D, Kp)
    cw2t = jnp.transpose(params['cluster_weights2'][0])          # (K, D)
    # torch flattens the per-sample (D, K) vlad as d*K + k; the kernels keep a
    # (K, D) layout (D on lanes), so re-lay hidden1_weights once:
    #   W[d*K + k, o] -> w[k*D + d, o]
    w_kd = jnp.transpose(params['hidden1_weights'].reshape(d, k, o),
                         (1, 0, 2)).reshape(k * d, o).astype(mm_dtype)
    gw = params['gating_weights'].astype(mm_dtype)               # (O, O)

    return {
        'cw': cw, 'cw2t': cw2t.astype(jnp.float32), 'w': w_kd, 'gw': gw,
        'dims': {'D': d, 'K': k, 'Kp': kp, 'O': o},
    }


def netvlad_forward(x, prep):
    """x: (B, max_samples, feature_size) f32 -> (B, output_dim) f32."""
    B, N, D = x.shape
    dims = prep['dims']
    K, Kp, O = dims['K'], dims['Kp'], dims['O']
    assert D == dims['D']
    f32 = jnp.float32
    mm_dtype = prep['cw'].dtype
    rows = B * N
    KD = K * D
    vmem_limit = _vmem_limit_bytes()

    x_mm = x.astype(mm_dtype)             # halves the phase-1/2 HBM stream
    x2d = x_mm.reshape(rows, D)           # leading-dim merge, free

    isz = lambda a: a.size * a.dtype.itemsize

    # ---- phase 1: BatchNorm1d(K) training-mode batch stats over all B*N rows
    row_tile = _largest_divisor(rows, (512, 256, 128, 64, 32, 16, 8))
    mean, invstd = pl.pallas_call(
        functools.partial(_bn_stats_kernel, inv_count=1.0 / rows),
        out_shape=(jax.ShapeDtypeStruct((1, Kp), f32),
                   jax.ShapeDtypeStruct((1, Kp), f32)),
        grid_spec=pltpu.PrefetchScalarGridSpec(
            num_scalar_prefetch=0,
            grid=(rows // row_tile,),
            in_specs=[pl.BlockSpec((row_tile, D), lambda i: (i, 0)),
                      pl.BlockSpec((D, Kp), lambda i: (0, 0))],
            out_specs=[pl.BlockSpec((1, Kp), lambda i: (0, 0)),
                       pl.BlockSpec((1, Kp), lambda i: (0, 0))],
            scratch_shapes=[pltpu.VMEM((1, Kp), f32),
                            pltpu.VMEM((1, Kp), f32)]),
        compiler_params=pltpu.CompilerParams(
            dimension_semantics=("arbitrary",),
            vmem_limit_bytes=vmem_limit),
        cost_estimate=pl.CostEstimate(
            flops=2 * rows * D * Kp + 4 * rows * Kp,
            transcendentals=0,
            bytes_accessed=isz(x2d) + isz(prep['cw']) + 2 * Kp * 4),
    )(x2d, prep['cw'])

    # ---- phase 2: assignment/softmax/aggregation/normalisation,
    #      TB samples per grid step ("parallel" -> megacore sharding)
    tb = _pick_batch_tile(B)
    vlad = pl.pallas_call(
        functools.partial(_vlad_kernel, k_valid=K),
        out_shape=jax.ShapeDtypeStruct((B, K, D), mm_dtype),
        grid_spec=pltpu.PrefetchScalarGridSpec(
            num_scalar_prefetch=0,
            grid=(B // tb,),
            in_specs=[pl.BlockSpec((tb, N, D), lambda b: (b, 0, 0)),
                      pl.BlockSpec((D, Kp), lambda b: (0, 0)),
                      pl.BlockSpec((K, D), lambda b: (0, 0)),
                      pl.BlockSpec((1, Kp), lambda b: (0, 0)),
                      pl.BlockSpec((1, Kp), lambda b: (0, 0))],
            out_specs=pl.BlockSpec((tb, K, D), lambda b: (b, 0, 0))),
        compiler_params=pltpu.CompilerParams(
            dimension_semantics=("parallel",),
            vmem_limit_bytes=vmem_limit),
        cost_estimate=pl.CostEstimate(
            flops=2 * rows * D * Kp + 2 * rows * Kp * D + 10 * B * K * D,
            transcendentals=rows * Kp,
            bytes_accessed=(isz(x_mm) + isz(prep['cw']) + isz(prep['cw2t'])
                            + 2 * Kp * 4 + B * K * D * x_mm.dtype.itemsize)),
    )(x_mm, prep['cw'], prep['cw2t'], mean, invstd)

    # ---- phase 3: hidden projection tiled over the flattened K*D reduction
    #      (one long MXU contraction per weight tile) + context gating
    vlad2d = vlad.reshape(B, KD)          # trailing-dim merge, free
    w2d = prep['w']                       # (K*D, O), laid out once in prepare
    wsz, vsz = w2d.dtype.itemsize, vlad2d.dtype.itemsize
    per_unit = 2 * (O * wsz + B * vsz)    # double-buffered streamed windows
    tile_kd = _pick_kd_tile(KD, per_unit, vmem_limit // 2)
    n_kd = KD // tile_kd

    w_spec = pl.BlockSpec((tile_kd, O), lambda kt: (kt, 0))
    if (n_kd >= 3 and vmem_limit > 72 * 1024 * 1024
            and 3 * tile_kd * O * wsz + 2 * tile_kd * B * vsz <= vmem_limit // 2):
        # Third weight buffer hides DMA issue latency on 128-MiB parts
        # (v5e/v6e); keep the default 2 buffers on v7x's 64-MiB VMEM.
        w_spec = pl.BlockSpec((tile_kd, O), lambda kt: (kt, 0),
                              pipeline_mode=pl.Buffered(3))

    out = pl.pallas_call(
        _head_kernel,
        out_shape=jax.ShapeDtypeStruct((B, O), f32),
        grid_spec=pltpu.PrefetchScalarGridSpec(
            num_scalar_prefetch=0,
            grid=(n_kd,),
            in_specs=[pl.BlockSpec((B, tile_kd), lambda kt: (0, kt)),
                      w_spec,
                      pl.BlockSpec((O, O), lambda kt: (0, 0))],
            out_specs=pl.BlockSpec((B, O), lambda kt: (0, 0)),
            scratch_shapes=[pltpu.VMEM((B, O), f32)]),
        compiler_params=pltpu.CompilerParams(
            dimension_semantics=("arbitrary",),
            vmem_limit_bytes=vmem_limit),
        cost_estimate=pl.CostEstimate(
            flops=2 * B * KD * O + 2 * B * O * O + 6 * B * O,
            transcendentals=B * O,
            bytes_accessed=isz(vlad2d) + isz(w2d) + isz(prep['gw']) + B * O * 4),
    )(vlad2d, w2d, prep['gw'])

    return out


if __name__ == "__main__":
    # Small shapes consistent with the module:
    #   feature_size=32, max_samples=8, cluster_size=16, output_dim=32, batch=2
    B, N, D, K, O = 2, 8, 32, 16, 32

    key = jax.random.PRNGKey(0)
    k_params, k_x = jax.random.split(key)
    params = init_netvlad_params(k_params, feature_size=D, cluster_size=K,
                                 output_dim=O)
    prep = prepare_netvlad_params(params, use_bf16_matmul=True)  # one-time prep
    x = jax.random.normal(k_x, (B, N, D), jnp.float32)

    out = netvlad_forward(x, prep)
    jax.block_until_ready(out)
    assert out.shape == (B, O) and out.dtype == jnp.float32
    assert bool(jnp.all(jnp.isfinite(out)))
    print("KERNEL_OK")
</pallas_src>

<mosaic_0001>
module attributes {stable_mosaic.version = 11 : i64} {
  func.func @_bn_stats_kernel(%arg0: i32, %arg1: memref<16x32xbf16, #tpu.memory_space<vmem>>, %arg2: memref<32x128xbf16, #tpu.memory_space<vmem>>, %arg3: memref<1x128xf32, #tpu.memory_space<vmem>>, %arg4: memref<1x128xf32, #tpu.memory_space<vmem>>, %arg5: memref<1x128xf32, #tpu.memory_space<vmem>>, %arg6: memref<1x128xf32, #tpu.memory_space<vmem>>) attributes {dimension_semantics = [#tpu.dimension_semantics<arbitrary>], iteration_bounds = array<i64: 1>, scalar_prefetch = 0 : i64, scratch_operands = 2 : i64, tpu.core_type = #tpu.core_type<tc>, window_params = [{transform_indices = @transform_0, window_bounds = array<i64: 16, 32>}, {pipeline_mode = #tpu.pipeline_mode<synchronous>, transform_indices = @transform_1, window_bounds = array<i64: 32, 128>}, {pipeline_mode = #tpu.pipeline_mode<synchronous>, transform_indices = @transform_2, window_bounds = array<i64: 1, 128>}, {pipeline_mode = #tpu.pipeline_mode<synchronous>, transform_indices = @transform_3, window_bounds = array<i64: 1, 128>}]} {
    %c0_i32 = arith.constant 0 : i32
    %0 = arith.cmpi eq, %arg0, %c0_i32 : i32
    %1 = arith.extui %0 : i1 to i32
    %c0_i32_0 = arith.constant 0 : i32
    %2 = arith.cmpi ne, %1, %c0_i32_0 : i32
    scf.if %2 {
      %cst_16 = arith.constant 0.000000e+00 : f32
      %20 = vector.broadcast %cst_16 : f32 to vector<1x128xf32>
      %c0_17 = arith.constant 0 : index
      %c0_18 = arith.constant 0 : index
      %21 = vector.load %arg5[%c0_17, %c0_18] : memref<1x128xf32, #tpu.memory_space<vmem>>, vector<1x128xf32>
      tpu.vector_store %arg5[%c0_17, %c0_18], %20 {strides = array<i32>} : memref<1x128xf32, #tpu.memory_space<vmem>>, vector<1x128xf32>,
      %cst_19 = arith.constant 0.000000e+00 : f32
      %22 = vector.broadcast %cst_19 : f32 to vector<1x128xf32>
      %c0_20 = arith.constant 0 : index
      %c0_21 = arith.constant 0 : index
      %23 = vector.load %arg6[%c0_20, %c0_21] : memref<1x128xf32, #tpu.memory_space<vmem>>, vector<1x128xf32>
      tpu.vector_store %arg6[%c0_20, %c0_21], %22 {strides = array<i32>} : memref<1x128xf32, #tpu.memory_space<vmem>>, vector<1x128xf32>,
    } else {
    }
    %c0 = arith.constant 0 : index
    %c0_1 = arith.constant 0 : index
    %3 = vector.load %arg1[%c0, %c0_1] : memref<16x32xbf16, #tpu.memory_space<vmem>>, vector<16x32xbf16>
    %c0_2 = arith.constant 0 : index
    %c0_3 = arith.constant 0 : index
    %4 = vector.load %arg2[%c0_2, %c0_3] : memref<32x128xbf16, #tpu.memory_space<vmem>>, vector<32x128xbf16>
    %cst = arith.constant dense<0.000000e+00> : vector<16x128xf32>
    %5 = tpu.matmul %3, %4, %cst {dimension_numbers = #tpu.dot_dimension_numbers<[1], [0], [0], [1], [0, 0, 1, 1], [], []>} : vector<16x32xbf16>, vector<32x128xbf16>, vector<16x128xf32> -> vector<16x128xf32>
    %c0_4 = arith.constant 0 : index
    %c0_5 = arith.constant 0 : index
    %6 = vector.load %arg5[%c0_4, %c0_5] : memref<1x128xf32, #tpu.memory_space<vmem>>, vector<1x128xf32>
    %cst_6 = arith.constant dense<0.000000e+00> : vector<128xf32>
    %7 = vector.multi_reduction <add>, %5, %cst_6 [0] : vector<16x128xf32> to vector<128xf32>
    %8 = vector.shape_cast %7 : vector<128xf32> to vector<1x128xf32>
    %9 = arith.addf %6, %8 : vector<1x128xf32>
    %c0_7 = arith.constant 0 : index
    %c0_8 = arith.constant 0 : index
    %10 = vector.load %arg5[%c0_7, %c0_8] : memref<1x128xf32, #tpu.memory_space<vmem>>, vector<1x128xf32>
    tpu.vector_store %arg5[%c0_7, %c0_8], %9 {strides = array<i32>} : memref<1x128xf32, #tpu.memory_space<vmem>>, vector<1x128xf32>,
    %c0_9 = arith.constant 0 : index
    %c0_10 = arith.constant 0 : index
    %11 = vector.load %arg6[%c0_9, %c0_10] : memref<1x128xf32, #tpu.memory_space<vmem>>, vector<1x128xf32>
    %12 = arith.mulf %5, %5 : vector<16x128xf32>
    %cst_11 = arith.constant dense<0.000000e+00> : vector<128xf32>
    %13 = vector.multi_reduction <add>, %12, %cst_11 [0] : vector<16x128xf32> to vector<128xf32>
    %14 = vector.shape_cast %13 : vector<128xf32> to vector<1x128xf32>
    %15 = arith.addf %11, %14 : vector<1x128xf32>
    %c0_12 = arith.constant 0 : index
    %c0_13 = arith.constant 0 : index
    %16 = vector.load %arg6[%c0_12, %c0_13] : memref<1x128xf32, #tpu.memory_space<vmem>>, vector<1x128xf32>
    tpu.vector_store %arg6[%c0_12, %c0_13], %15 {strides = array<i32>} : memref<1x128xf32, #tpu.memory_space<vmem>>, vector<1x128xf32>,
    %c0_i32_14 = arith.constant 0 : i32
    %17 = arith.cmpi eq, %arg0, %c0_i32_14 : i32
    %18 = arith.extui %17 : i1 to i32
    %c0_i32_15 = arith.constant 0 : i32
    %19 = arith.cmpi ne, %18, %c0_i32_15 : i32
    scf.if %19 {
      %c0_16 = arith.constant 0 : index
      %c0_17 = arith.constant 0 : index
      %20 = vector.load %arg5[%c0_16, %c0_17] : memref<1x128xf32, #tpu.memory_space<vmem>>, vector<1x128xf32>
      %cst_18 = arith.constant 6.250000e-02 : f32
      %21 = vector.broadcast %cst_18 : f32 to vector<1x128xf32>
      %22 = arith.mulf %20, %21 : vector<1x128xf32>
      %c0_19 = arith.constant 0 : index
      %c0_20 = arith.constant 0 : index
      %23 = vector.load %arg6[%c0_19, %c0_20] : memref<1x128xf32, #tpu.memory_space<vmem>>, vector<1x128xf32>
      %cst_21 = arith.constant 6.250000e-02 : f32
      %24 = vector.broadcast %cst_21 : f32 to vector<1x128xf32>
      %25 = arith.mulf %23, %24 : vector<1x128xf32>
      %26 = arith.mulf %22, %22 : vector<1x128xf32>
      %27 = arith.subf %25, %26 : vector<1x128xf32>
      %c0_22 = arith.constant 0 : index
      %c0_23 = arith.constant 0 : index
      %28 = vector.load %arg3[%c0_22, %c0_23] : memref<1x128xf32, #tpu.memory_space<vmem>>, vector<1x128xf32>
      tpu.vector_store %arg3[%c0_22, %c0_23], %22 {strides = array<i32>} : memref<1x128xf32, #tpu.memory_space<vmem>>, vector<1x128xf32>,
      %cst_24 = arith.constant 0.000000e+00 : f32
      %29 = vector.broadcast %cst_24 : f32 to vector<1x128xf32>
      %30 = arith.maximumf %27, %29 : vector<1x128xf32>
      %cst_25 = arith.constant 9.99999974E-6 : f32
      %31 = vector.broadcast %cst_25 : f32 to vector<1x128xf32>
      %32 = arith.addf %30, %31 : vector<1x128xf32>
      %33 = math.rsqrt %32 : vector<1x128xf32>
      %c0_26 = arith.constant 0 : index
      %c0_27 = arith.constant 0 : index
      %34 = vector.load %arg4[%c0_26, %c0_27] : memref<1x128xf32, #tpu.memory_space<vmem>>, vector<1x128xf32>
      tpu.vector_store %arg4[%c0_26, %c0_27], %33 {strides = array<i32>} : memref<1x128xf32, #tpu.memory_space<vmem>>, vector<1x128xf32>,
    } else {
    }
    return
  }
  func.func @transform_0(%arg0: i32) -> (i32, i32) {
    %c0_i32 = arith.constant 0 : i32
    %c0_i32_0 = arith.constant 0 : i32
    return %arg0, %c0_i32 : i32, i32
  }
  func.func @transform_1(%arg0: i32) -> (i32, i32) {
    %c0_i32 = arith.constant 0 : i32
    %c0_i32_0 = arith.constant 0 : i32
    %c0_i32_1 = arith.constant 0 : i32
    return %c0_i32, %c0_i32_0 : i32, i32
  }
  func.func @transform_2(%arg0: i32) -> (i32, i32) {
    %c0_i32 = arith.constant 0 : i32
    %c0_i32_0 = arith.constant 0 : i32
    %c0_i32_1 = arith.constant 0 : i32
    return %c0_i32, %c0_i32_0 : i32, i32
  }
  func.func @transform_3(%arg0: i32) -> (i32, i32) {
    %c0_i32 = arith.constant 0 : i32
    %c0_i32_0 = arith.constant 0 : i32
    %c0_i32_1 = arith.constant 0 : i32
    return %c0_i32, %c0_i32_0 : i32, i32
  }
}

</mosaic_0001>

<llo_original>
// kernel: tpu_custom_call.1
$region0: #{tpu_custom_call.1}
  #allocation0 [shape = 'u32[]', space=smem, size = 0x4, offset = 0x4, fixed_abs, tag = 'smem constant byte address 0x4 - core index']
  #allocation1 [shape = 'u32[144,128]{1,0:T(1,128)}', space=vmem, size = 0x12000, scoped, tag = 'internal scratch']
  #allocation2 [shape = 'f32[1,128]{1,0:T(1,128)}', space=vmem, size = 0x200, scoped, tag = 'scratch operand']
  #allocation3 [shape = 'f32[1,128]{1,0:T(1,128)}', space=vmem, size = 0x200, scoped, tag = 'scratch operand']
  %s0 = inlined_call_operand.hbm [shape: bf16[16,32], index: 0, kind: input, shape index: {}]
  %s1 = inlined_call_operand.hbm [shape: bf16[32,128], index: 1, kind: input, shape index: {}]
  %s2 = inlined_call_operand.hbm [shape: f32[1,128], index: 2, kind: output, shape index: {0}]
  %s3 = inlined_call_operand.hbm [shape: f32[1,128], index: 3, kind: output, shape index: {1}]
  %4 = xla_tuple %s2, %s3
  %s5 = sld [smem:[#allocation0]]
  $region42: #{tpu_custom_call.1} parent=0
    _
  %s7 = ssub.s32 1, %s5
  %s8 = scalar_select 0, %s7, %s5
  $region1: #{tpu_custom_call.1} parent=0
    #allocation4 [shape = 'u8[4096]{0}', space=vmem, size = 0x1000, scoped, tag = 'input window, operand 0, single buffered']
    #allocation5 [shape = 's32[1]{0}', space=sflag, size = 0x4, scoped, tag = 'scoped memory for tpu_custom_call.1']
    #allocation6 [shape = 's32[1]{0}', space=sflag, size = 0x4, scoped, tag = 'scoped memory for tpu_custom_call.1']
    #allocation7 [shape = 'u8[8192]{0}', space=vmem, size = 0x2000, scoped, tag = 'input window, operand 1, single buffered']
    #allocation8 [shape = 's32[1]{0}', space=sflag, size = 0x4, scoped, tag = 'scoped memory for tpu_custom_call.1']
    #allocation9 [shape = 'u8[512]{0}', space=vmem, size = 0x400, scoped, tag = 'output window, operand 0, single buffered']
    #allocation10 [shape = 'u8[512]{0}', space=vmem, size = 0x400, scoped, tag = 'output window, operand 1, single buffered']
    #allocation11 [shape = 's32[1]{0}', space=sflag, size = 0x4, scoped, tag = 'scoped memory for tpu_custom_call.1']
    %9 = vsyncpa [#allocation5], 0
    %10 = vsyncpa [#allocation8], 0
    %11 = vsyncpa [#allocation6], 0
    %12 = vsyncpa [#allocation11], 0
    // Predicated region
    $region2: #{tpu_custom_call.1} parent=1 // pred_check
      _
    $region3: #{tpu_custom_call.1} parent=1 // pred_check_branch
      %14 = sbr.rel (0) target = $region5
    $region4: #{tpu_custom_call.1} parent=1 // pred_region
      %s16 = ssub.s32 128, 128
      %17 = vsyncadd [#allocation5], %s16
      %s18 = sshll.u32 [#allocation4], 4
      %s19 = int_to_ptr.vmem [resolvable:$true] %s18
      %24 = dma.hbm_to_vmem [thread:$0]  %s0, 128, %s19, [#allocation5], 64, 64, 4
    $region5: #{tpu_custom_call.1} parent=1 // pred_fallthru
      _
    // Predicated region
    $region6: #{tpu_custom_call.1} parent=1 // pred_check
      _
    $region7: #{tpu_custom_call.1} parent=1 // pred_check_branch
      %26 = sbr.rel (0) target = $region9
    $region8: #{tpu_custom_call.1} parent=1 // pred_region
      %s28 = ssub.s32 256, 256
      %29 = vsyncadd [#allocation8], %s28
      %s30 = sshll.u32 [#allocation7], 4
      %s31 = int_to_ptr.vmem [resolvable:$true] %s30
      %36 = dma.hbm_to_vmem [thread:$0]  %s1, 256, %s31, [#allocation8], 64, 64, 4
    $region9: #{tpu_custom_call.1} parent=1 // pred_fallthru
      _
    // Predicated region
    $region10: #{tpu_custom_call.1} parent=1 // pred_check
      _
    $region11: #{tpu_custom_call.1} parent=1 // pred_check_branch
      %38 = sbr.rel (0) target = $region13
    $region12: #{tpu_custom_call.1} parent=1 // pred_region
      %39 = dma.done [#allocation5], 128
    $region13: #{tpu_custom_call.1} parent=1 // pred_fallthru
      _
    // Predicated region
    $region14: #{tpu_custom_call.1} parent=1 // pred_check
      _
    $region15: #{tpu_custom_call.1} parent=1 // pred_check_branch
      %41 = sbr.rel (0) target = $region17
    $region16: #{tpu_custom_call.1} parent=1 // pred_region
      %42 = dma.done [#allocation8], 256
    $region17: #{tpu_custom_call.1} parent=1 // pred_fallthru
      _
    %p44 = scmp.eq.s32.totalorder 0, 0
    // Predicated region
    $region18: #{tpu_custom_call.1} parent=1 // pred_check
      %p45 = pneg %p44
    $region19: #{tpu_custom_call.1} parent=1 // pred_check_branch
      %47 = sbr.rel (%p45) target = $region21
    $region20: #{tpu_custom_call.1} parent=1 // pred_region
      %48 = vst [vmem:[#allocation2] sm:$0x1] 0.0
      %49 = vst [vmem:[#allocation3] sm:$0x1] 0.0
    $region21: #{tpu_custom_call.1} parent=1 // pred_fallthru
      _
    %v50 = vld [vmem:[#allocation4] sm:$0xf]
    %v51 = vld [vmem:[#allocation4 + $0x4] sm:$0xf]
    %v52 = vld [vmem:[#allocation7] sm:$0xf]
    %v53 = vld [vmem:[#allocation7 + $0x4] sm:$0xf]
    %v54 = vld [vmem:[#allocation7 + $0x8] sm:$0xf]
    %v55 = vld [vmem:[#allocation7 + $0xc] sm:$0xf]
    %v58 = vunpack.c.l.b16 %v50
    %v59 = vunpack.c.l.b16 %v51
    %v60 = vpack.c.b16 %v59, %v58
    %v65 = vunpack.c.l.b16 %v52
    %v66 = vunpack.c.l.b16 %v53
    %v67 = vunpack.c.l.b16 %v54
    %v68 = vunpack.c.l.b16 %v55
    %v69 = vpack.c.b16 %v66, %v65
    %v70 = vpack.c.b16 %v68, %v67
    %vm73 = vcmask 261120
    %v75 = vsel %vm73, %v60, 0
    %77 = vmatprep.subr.bf16.mxu0 0
    %78 = vmatpush1.bf16.msra.mxu0 0
    %79 = vmatprep.subr.bf16.mxu0 0
    %80 = vmatpush1.bf16.msra.mxu0 0
    %81 = vmatprep.subr.bf16.mxu0 0
    %82 = vmatpush1.bf16.msra.mxu0 0
    %83 = vmatprep.subr.bf16.mxu0 0
    %84 = vmatpush1.bf16.msra.mxu0 0
    %85 = vmatprep.subr.bf16.mxu0 0
    %86 = vmatpush1.bf16.msra.mxu0 0
    %87 = vmatprep.subr.bf16.mxu0 0
    %88 = vmatpush1.bf16.msra.mxu0 0
    %89 = vmatprep.subr.bf16.mxu0 0
    %90 = vmatpush1.bf16.msra.mxu0 %v70
    %91 = vmatprep.subr.bf16.mxu0 0
    %92 = vmatpush1.bf16.msra.mxu0 %v69
    %93 = vmatprep.subr.bf16.mxu0 0
    %94 = vmatpush2.bf16.msra.mxu0 0
    %95 = vmatprep.subr.bf16.mxu0 0
    %96 = vmatpush2.bf16.msra.mxu0 0
    %97 = vmatprep.subr.bf16.mxu0 0
    %98 = vmatpush2.bf16.msra.mxu0 0
    %99 = vmatprep.subr.bf16.mxu0 0
    %100 = vmatpush2.bf16.msra.mxu0 0
    %101 = vmatprep.subr.bf16.mxu0 0
    %102 = vmatpush2.bf16.msra.mxu0 0
    %103 = vmatprep.subr.bf16.mxu0 0
    %104 = vmatpush2.bf16.msra.mxu0 0
    %105 = vmatprep.subr.bf16.mxu0 0
    %106 = vmatpush2.bf16.msra.mxu0 0
    %107 = vmatprep.subr.bf16.mxu0 0
    %108 = vmatpush2.bf16.msra.mxu0 0
    %109 = vmatprep.mubr.bf16.mxu0 0
    %110 = vmatmul.mubr.bf16.gmra.mxu0 %v75
    %v111 = vpop.f32.mrf.mxu0
    %v112 = vadd.f32 0.0, %v111
    %v113 = vpop.f32.mrf.mxu0
    %v114 = vpop.f32.mrf.mxu0
    %v115 = vadd.f32 0.0, %v114
    %v116 = vpop.f32.mrf.mxu0
    %117 = vdwg.mxu0
    %v118 = vld [vmem:[#allocation2] sm:$0x1]
    %v119 = vadd.f32 %v112, %v115
    %v120 = vrot.slane %v119, 4
    %v121 = vadd.f32 %v119, %v120
    %v122 = vrot.slane %v121, 2
    %v123 = vadd.f32 %v121, %v122
    %v124 = vrot.slane %v123, 1
    %v125 = vadd.f32 %v123, %v124
    %v126 = vadd.f32 %v118, %v125
    %127 = vst [vmem:[#allocation2] sm:$0x1] %v126
    %v128 = vld [vmem:[#allocation3] sm:$0x1]
    %v129 = vmul.f32 %v112, %v112
    %v130 = vmul.f32 %v115, %v115
    %v131 = vadd.f32 %v129, %v130
    %v132 = vrot.slane %v131, 4
    %v133 = vadd.f32 %v131, %v132
    %v134 = vrot.slane %v133, 2
    %v135 = vadd.f32 %v133, %v134
    %v136 = vrot.slane %v135, 1
    %v137 = vadd.f32 %v135, %v136
    %v138 = vadd.f32 %v128, %v137
    %139 = vst [vmem:[#allocation3] sm:$0x1] %v138
    // Predicated region
    $region22: #{tpu_custom_call.1} parent=1 // pred_check
      %p140 = pneg %p44
    $region23: #{tpu_custom_call.1} parent=1 // pred_check_branch
      %142 = sbr.rel (%p140) target = $region25
    $region24: #{tpu_custom_call.1} parent=1 // pred_region
      %v143 = vld [vmem:[#allocation2] sm:$0x1]
      %v144 = vmul.f32 %v143, 0.0625
      %v145 = vld [vmem:[#allocation3] sm:$0x1]
      %v146 = vmul.f32 %v145, 0.0625
      %v147 = vmul.f32 %v144, %v144
      %v148 = vsub.f32 %v146, %v147
      %149 = vst [vmem:[#allocation9] sm:$0x1] %v144
      %v150 = vmax.f32 %v148, 0.0
      %v151 = vadd.f32 %v150, 1e-05
      %v152 = vrsqrt.pop %v151
      %153 = vst [vmem:[#allocation10] sm:$0x1] %v152
    $region25: #{tpu_custom_call.1} parent=1 // pred_fallthru
      _
    // Predicated region
    $region26: #{tpu_custom_call.1} parent=1 // pred_check
      _
    $region27: #{tpu_custom_call.1} parent=1 // pred_check_branch
      %155 = sbr.rel (0) target = $region29
    $region28: #{tpu_custom_call.1} parent=1 // pred_region
      %s157 = ssub.s32 16, 16
      %158 = vsyncadd [#allocation6], %s157
      %s160 = sshll.u32 [#allocation9], 4
      %s161 = int_to_ptr.vmem [resolvable:$true] %s160
      %163 = dma.vmem_to_hbm [thread:$0]  %s161, 16, %s2, [#allocation6]
    $region29: #{tpu_custom_call.1} parent=1 // pred_fallthru
      _
    // Predicated region
    $region30: #{tpu_custom_call.1} parent=1 // pred_check
      _
    $region31: #{tpu_custom_call.1} parent=1 // pred_check_branch
      %165 = sbr.rel (0) target = $region33
    $region32: #{tpu_custom_call.1} parent=1 // pred_region
      %s167 = ssub.s32 16, 16
      %168 = vsyncadd [#allocation11], %s167
      %s170 = sshll.u32 [#allocation10], 4
      %s171 = int_to_ptr.vmem [resolvable:$true] %s170
      %173 = dma.vmem_to_hbm [thread:$0]  %s171, 16, %s3, [#allocation11]
    $region33: #{tpu_custom_call.1} parent=1 // pred_fallthru
      _
    // Predicated region
    $region34: #{tpu_custom_call.1} parent=1 // pred_check
      _
    $region35: #{tpu_custom_call.1} parent=1 // pred_check_branch
      %175 = sbr.rel (0) target = $region37
    $region36: #{tpu_custom_call.1} parent=1 // pred_region
      %176 = dma.done [#allocation6], 16
    $region37: #{tpu_custom_call.1} parent=1 // pred_fallthru
      _
    // Predicated region
    $region38: #{tpu_custom_call.1} parent=1 // pred_check
      _
    $region39: #{tpu_custom_call.1} parent=1 // pred_check_branch
      %178 = sbr.rel (0) target = $region41
    $region40: #{tpu_custom_call.1} parent=1 // pred_region
      %179 = dma.done [#allocation11], 16
    $region41: #{tpu_custom_call.1} parent=1 // pred_fallthru
      _
    %180 = vsyncpa [#allocation5], 1
    %181 = vsyncpa [#allocation8], 1
    %182 = vsyncpa [#allocation6], 1
    %183 = vsyncpa [#allocation11], 1

</llo_original>
